<compile_context>
chip_gen: v6e
topology: v6e:2x2x1
jax: 0.10.0
libtpu: 0.0.40
codegen_flags: <defaults>
</compile_context>

<pallas_src>
import jax
import jax.numpy as jnp
from jax.experimental import pallas as pl
from jax.experimental.pallas import tpu as pltpu


def _round_up(n, m):
    return ((n + m - 1) // m) * m


def _q_mlp_kernel(x_ref, w1_ref, b1_ref, w2_ref, b2_ref, w3_ref, b3_ref,
                  wf_ref, bf_ref, o_ref):
    # x_ref: (Din, TB) f32, batch on the lane axis.
    x = x_ref[...]

    # Layer 1: Linear(Din, N0) + ReLU.  (Dropout == identity in eval.)
    if x_ref.shape[0] == 1:
        # Din == 1 -> K=1 matmul is pure overhead on the MXU; do it as a VPU
        # broadcast outer product instead: (N0,1)*(1,TB) -> (N0,TB), all f32.
        h = w1_ref[...] * x + b1_ref[...]
    else:
        h = jnp.dot(w1_ref[...].astype(jnp.bfloat16), x.astype(jnp.bfloat16),
                    preferred_element_type=jnp.float32) + b1_ref[...]
    h = jnp.maximum(h, 0.0)

    # Layer 2: Linear(N0, N1) + ReLU.  bf16 MXU inputs, f32 accumulation,
    # bias add / ReLU in f32 (v5e VPU has no bf16 path).
    h = jnp.dot(w2_ref[...], h.astype(jnp.bfloat16),
                preferred_element_type=jnp.float32)
    h = jnp.maximum(h + b2_ref[...], 0.0)

    # Layer 3: Linear(N1, N2) + ReLU.  (Dropout == identity in eval.)
    h = jnp.dot(w3_ref[...], h.astype(jnp.bfloat16),
                preferred_element_type=jnp.float32)
    h = jnp.maximum(h + b3_ref[...], 0.0)

    # Q fused quantile heads: (Q, N2) @ (N2, TB) -> (Q, TB).
    # Batch is on the lane axis, so the output store is lane-dense.
    out = jnp.dot(wf_ref[...], h.astype(jnp.bfloat16),
                  preferred_element_type=jnp.float32)
    o_ref[...] = (out + bf_ref[...]).astype(o_ref.dtype)


def q_model_3l_forward(x, params, *, batch_tile=512):
    """x: (B, Din) float32.  Returns (B, Q) float32 (PyTorch cat(dim=1) contract)."""
    B, din = x.shape
    n0 = params["w1"].shape[0]
    n1 = params["w2"].shape[0]
    n2 = params["w3"].shape[0]
    q = params["wf"].shape[0]

    # Batch tile: multiple of 128 (lane axis), large to amortize per-step overhead.
    tb = min(_round_up(batch_tile, 128), _round_up(B, 128))
    b_pad = _round_up(B, tb)
    grid = (b_pad // tb,)

    # Transpose to features-major and zero-pad the batch up to a tile multiple.
    xt = x.astype(jnp.float32).T                       # (Din, B)
    if b_pad != B:
        xt = jnp.pad(xt, ((0, 0), (0, b_pad - B)))

    def resident(a):
        # Full-array block, constant index_map -> loaded once, stays in VMEM.
        return pl.BlockSpec(a.shape, lambda i: (0, 0))

    args = (xt, params["w1"], params["b1"], params["w2"], params["b2"],
            params["w3"], params["b3"], params["wf"], params["bf"])
    in_specs = [pl.BlockSpec((din, tb), lambda i: (0, i))] + \
               [resident(a) for a in args[1:]]
    out_specs = pl.BlockSpec((q, tb), lambda i: (0, i))

    flops = 2 * b_pad * (din * n0 + n0 * n1 + n1 * n2 + n2 * q)
    weight_bytes = sum(int(a.size) * a.dtype.itemsize for a in args[1:])
    bytes_accessed = int(xt.size) * 4 + b_pad * q * 4 + weight_bytes

    out_t = pl.pallas_call(
        _q_mlp_kernel,
        out_shape=jax.ShapeDtypeStruct((q, b_pad), jnp.float32),
        grid_spec=pltpu.PrefetchScalarGridSpec(
            num_scalar_prefetch=0,
            grid=grid,
            in_specs=in_specs,
            out_specs=out_specs,
        ),
        compiler_params=pltpu.CompilerParams(
            dimension_semantics=("parallel",)),       # megacore sharding on v7x
        cost_estimate=pl.CostEstimate(
            flops=flops, transcendentals=0, bytes_accessed=bytes_accessed),
    )(*args)

    # Back to the PyTorch (B, Q) contract; drop batch padding.
    return out_t[:, :B].T


def _orthogonal(key, shape):
    """Deterministic orthogonal-ish init (QR of a gaussian), mirrors nn.init.orthogonal_."""
    rows, cols = shape
    n = max(rows, cols)
    a = jax.random.normal(key, (n, n), dtype=jnp.float32)
    qm, r = jnp.linalg.qr(a)
    qm = qm * jnp.sign(jnp.diag(r))[None, :]
    return qm[:rows, :cols]


def make_params(key, in_shape, neur_shapes, num_quantiles):
    n0, n1, n2 = neur_shapes
    assert n2 == 32, "final heads are Linear(32, 1) as in the reference module"
    keys = jax.random.split(key, 3 + num_quantiles)
    params = {
        # Layer-1 weight stays f32: with Din==1 it runs on the VPU (no MXU),
        # and v5e's VPU has no bf16 path -> keep elementwise math in f32.
        "w1": _orthogonal(keys[0], (n0, in_shape)).astype(jnp.float32),   # (N0, Din)
        "b1": jnp.zeros((n0, 1), jnp.float32),
        # MXU-facing weights stored in bf16 (f32 accumulation in-kernel).
        "w2": _orthogonal(keys[1], (n1, n0)).astype(jnp.bfloat16),        # (N1, N0)
        "b2": jnp.zeros((n1, 1), jnp.float32),
        "w3": _orthogonal(keys[2], (n2, n1)).astype(jnp.bfloat16),        # (N2, N1)
        "b3": jnp.zeros((n2, 1), jnp.float32),
    }
    # Stack the Q independent Linear(32, 1) heads into one (Q, 32) matrix.
    heads = [_orthogonal(keys[3 + i], (1, n2)) for i in range(num_quantiles)]
    params["wf"] = jnp.concatenate(heads, axis=0).astype(jnp.bfloat16)    # (Q, 32)
    params["bf"] = jnp.zeros((num_quantiles, 1), jnp.float32)             # (Q, 1)
    return params


def reference_forward(x, params, *, bf16_matmuls=True):
    """Pure-JAX reference of the PyTorch forward (eval mode).

    bf16_matmuls=True mirrors the kernel's mixed-precision path exactly;
    False is the plain full-f32 forward (used with a loose tolerance).
    """
    w1 = params["w1"].astype(jnp.float32)              # (N0, Din)
    b1 = params["b1"].T                                # (1, N0)
    if x.shape[1] == 1:
        h = x * w1.T + b1                              # matches kernel's VPU path exactly
    else:
        h = jnp.dot(x, w1.T, precision=jax.lax.Precision.HIGHEST) + b1
    h = jnp.maximum(h, 0.0)

    def mm(a, w):
        if bf16_matmuls:
            return jnp.dot(a.astype(jnp.bfloat16), w.astype(jnp.bfloat16).T,
                           preferred_element_type=jnp.float32)
        return jnp.dot(a, w.astype(jnp.float32).T,
                       precision=jax.lax.Precision.HIGHEST)

    h = jnp.maximum(mm(h, params["w2"]) + params["b2"].T, 0.0)
    h = jnp.maximum(mm(h, params["w3"]) + params["b3"].T, 0.0)
    return mm(h, params["wf"]) + params["bf"].T


if __name__ == "__main__":
    quantiles = (0.1, 0.5, 0.9)
    neur_shapes = (64, 64, 32)
    in_shape = 1
    batch = 8

    key = jax.random.PRNGKey(0)
    kx, kp = jax.random.split(key)
    x = jax.random.normal(kx, (batch, in_shape), dtype=jnp.float32)
    params = make_params(kp, in_shape, neur_shapes, len(quantiles))

    out = q_model_3l_forward(x, params)
    out = jax.block_until_ready(out)

    assert out.shape == (batch, len(quantiles)), out.shape
    # Tight check vs. the algorithm-identical (bf16 matmul, f32 accumulate) reference.
    ref_bf16 = reference_forward(x, params, bf16_matmuls=True)
    assert jnp.allclose(out, ref_bf16, atol=2e-3, rtol=2e-3), \
        "kernel mismatch vs bf16-path reference"
    # Loose check vs. the full-f32 PyTorch-semantics reference (bf16 rounding slack).
    ref_f32 = reference_forward(x, params, bf16_matmuls=False)
    assert jnp.allclose(out, ref_f32, atol=6e-2, rtol=6e-2), \
        "kernel mismatch vs f32 reference"
    print("KERNEL_OK")
</pallas_src>

<mosaic_0001>
module attributes {stable_mosaic.version = 11 : i64} {
  func.func @_q_mlp_kernel(%arg0: i32, %arg1: memref<1x128xf32, #tpu.memory_space<vmem>>, %arg2: memref<64x1xf32, #tpu.memory_space<vmem>>, %arg3: memref<64x1xf32, #tpu.memory_space<vmem>>, %arg4: memref<64x64xbf16, #tpu.memory_space<vmem>>, %arg5: memref<64x1xf32, #tpu.memory_space<vmem>>, %arg6: memref<32x64xbf16, #tpu.memory_space<vmem>>, %arg7: memref<32x1xf32, #tpu.memory_space<vmem>>, %arg8: memref<3x32xbf16, #tpu.memory_space<vmem>>, %arg9: memref<3x1xf32, #tpu.memory_space<vmem>>, %arg10: memref<3x128xf32, #tpu.memory_space<vmem>>) attributes {dimension_semantics = [#tpu.dimension_semantics<parallel>], iteration_bounds = array<i64: 1>, scalar_prefetch = 0 : i64, scratch_operands = 0 : i64, tpu.core_type = #tpu.core_type<tc>, window_params = [{transform_indices = @transform_0, window_bounds = array<i64: 1, 128>}, {pipeline_mode = #tpu.pipeline_mode<synchronous>, transform_indices = @transform_1, window_bounds = array<i64: 64, 1>}, {pipeline_mode = #tpu.pipeline_mode<synchronous>, transform_indices = @transform_2, window_bounds = array<i64: 64, 1>}, {pipeline_mode = #tpu.pipeline_mode<synchronous>, transform_indices = @transform_3, window_bounds = array<i64: 64, 64>}, {pipeline_mode = #tpu.pipeline_mode<synchronous>, transform_indices = @transform_4, window_bounds = array<i64: 64, 1>}, {pipeline_mode = #tpu.pipeline_mode<synchronous>, transform_indices = @transform_5, window_bounds = array<i64: 32, 64>}, {pipeline_mode = #tpu.pipeline_mode<synchronous>, transform_indices = @transform_6, window_bounds = array<i64: 32, 1>}, {pipeline_mode = #tpu.pipeline_mode<synchronous>, transform_indices = @transform_7, window_bounds = array<i64: 3, 32>}, {pipeline_mode = #tpu.pipeline_mode<synchronous>, transform_indices = @transform_8, window_bounds = array<i64: 3, 1>}, {transform_indices = @transform_9, window_bounds = array<i64: 3, 128>}]} {
    %c0 = arith.constant 0 : index
    %c0_0 = arith.constant 0 : index
    %0 = vector.load %arg1[%c0, %c0_0] : memref<1x128xf32, #tpu.memory_space<vmem>>, vector<1x128xf32>
    %c0_1 = arith.constant 0 : index
    %c0_2 = arith.constant 0 : index
    %1 = vector.load %arg2[%c0_1, %c0_2] : memref<64x1xf32, #tpu.memory_space<vmem>>, vector<64x1xf32>
    %2 = vector.broadcast %1 : vector<64x1xf32> to vector<64x128xf32>
    %3 = vector.broadcast %0 : vector<1x128xf32> to vector<64x128xf32>
    %4 = arith.mulf %2, %3 : vector<64x128xf32>
    %c0_3 = arith.constant 0 : index
    %c0_4 = arith.constant 0 : index
    %5 = vector.load %arg3[%c0_3, %c0_4] : memref<64x1xf32, #tpu.memory_space<vmem>>, vector<64x1xf32>
    %6 = vector.broadcast %5 : vector<64x1xf32> to vector<64x128xf32>
    %7 = arith.addf %4, %6 : vector<64x128xf32>
    %cst = arith.constant 0.000000e+00 : f32
    %8 = vector.broadcast %cst : f32 to vector<64x128xf32>
    %9 = arith.maximumf %7, %8 : vector<64x128xf32>
    %c0_5 = arith.constant 0 : index
    %c0_6 = arith.constant 0 : index
    %10 = vector.load %arg4[%c0_5, %c0_6] : memref<64x64xbf16, #tpu.memory_space<vmem>>, vector<64x64xbf16>
    %11 = arith.truncf %9 : vector<64x128xf32> to vector<64x128xbf16>
    %cst_7 = arith.constant dense<0.000000e+00> : vector<64x128xf32>
    %12 = tpu.matmul %10, %11, %cst_7 {dimension_numbers = #tpu.dot_dimension_numbers<[1], [0], [0], [1], [0, 0, 1, 1], [], []>} : vector<64x64xbf16>, vector<64x128xbf16>, vector<64x128xf32> -> vector<64x128xf32>
    %c0_8 = arith.constant 0 : index
    %c0_9 = arith.constant 0 : index
    %13 = vector.load %arg5[%c0_8, %c0_9] : memref<64x1xf32, #tpu.memory_space<vmem>>, vector<64x1xf32>
    %14 = vector.broadcast %13 : vector<64x1xf32> to vector<64x128xf32>
    %15 = arith.addf %12, %14 : vector<64x128xf32>
    %cst_10 = arith.constant 0.000000e+00 : f32
    %16 = vector.broadcast %cst_10 : f32 to vector<64x128xf32>
    %17 = arith.maximumf %15, %16 : vector<64x128xf32>
    %c0_11 = arith.constant 0 : index
    %c0_12 = arith.constant 0 : index
    %18 = vector.load %arg6[%c0_11, %c0_12] : memref<32x64xbf16, #tpu.memory_space<vmem>>, vector<32x64xbf16>
    %19 = arith.truncf %17 : vector<64x128xf32> to vector<64x128xbf16>
    %cst_13 = arith.constant dense<0.000000e+00> : vector<32x128xf32>
    %20 = tpu.matmul %18, %19, %cst_13 {dimension_numbers = #tpu.dot_dimension_numbers<[1], [0], [0], [1], [0, 0, 1, 1], [], []>} : vector<32x64xbf16>, vector<64x128xbf16>, vector<32x128xf32> -> vector<32x128xf32>
    %c0_14 = arith.constant 0 : index
    %c0_15 = arith.constant 0 : index
    %21 = vector.load %arg7[%c0_14, %c0_15] : memref<32x1xf32, #tpu.memory_space<vmem>>, vector<32x1xf32>
    %22 = vector.broadcast %21 : vector<32x1xf32> to vector<32x128xf32>
    %23 = arith.addf %20, %22 : vector<32x128xf32>
    %cst_16 = arith.constant 0.000000e+00 : f32
    %24 = vector.broadcast %cst_16 : f32 to vector<32x128xf32>
    %25 = arith.maximumf %23, %24 : vector<32x128xf32>
    %c0_17 = arith.constant 0 : index
    %c0_18 = arith.constant 0 : index
    %26 = vector.load %arg8[%c0_17, %c0_18] : memref<3x32xbf16, #tpu.memory_space<vmem>>, vector<3x32xbf16>
    %27 = arith.truncf %25 : vector<32x128xf32> to vector<32x128xbf16>
    %cst_19 = arith.constant dense<0.000000e+00> : vector<3x128xf32>
    %28 = tpu.matmul %26, %27, %cst_19 {dimension_numbers = #tpu.dot_dimension_numbers<[1], [0], [0], [1], [0, 0, 1, 1], [], []>} : vector<3x32xbf16>, vector<32x128xbf16>, vector<3x128xf32> -> vector<3x128xf32>
    %c0_20 = arith.constant 0 : index
    %c0_21 = arith.constant 0 : index
    %29 = vector.load %arg9[%c0_20, %c0_21] : memref<3x1xf32, #tpu.memory_space<vmem>>, vector<3x1xf32>
    %30 = vector.broadcast %29 : vector<3x1xf32> to vector<3x128xf32>
    %31 = arith.addf %28, %30 : vector<3x128xf32>
    %c0_22 = arith.constant 0 : index
    %c0_23 = arith.constant 0 : index
    %32 = vector.load %arg10[%c0_22, %c0_23] : memref<3x128xf32, #tpu.memory_space<vmem>>, vector<3x128xf32>
    tpu.vector_store %arg10[%c0_22, %c0_23], %31 {strides = array<i32>} : memref<3x128xf32, #tpu.memory_space<vmem>>, vector<3x128xf32>,
    return
  }
  func.func @transform_0(%arg0: i32) -> (i32, i32) {
    %c0_i32 = arith.constant 0 : i32
    %c0_i32_0 = arith.constant 0 : i32
    return %c0_i32, %arg0 : i32, i32
  }
  func.func @transform_1(%arg0: i32) -> (i32, i32) {
    %c0_i32 = arith.constant 0 : i32
    %c0_i32_0 = arith.constant 0 : i32
    %c0_i32_1 = arith.constant 0 : i32
    return %c0_i32, %c0_i32_0 : i32, i32
  }
  func.func @transform_2(%arg0: i32) -> (i32, i32) {
    %c0_i32 = arith.constant 0 : i32
    %c0_i32_0 = arith.constant 0 : i32
    %c0_i32_1 = arith.constant 0 : i32
    return %c0_i32, %c0_i32_0 : i32, i32
  }
  func.func @transform_3(%arg0: i32) -> (i32, i32) {
    %c0_i32 = arith.constant 0 : i32
    %c0_i32_0 = arith.constant 0 : i32
    %c0_i32_1 = arith.constant 0 : i32
    return %c0_i32, %c0_i32_0 : i32, i32
  }
  func.func @transform_4(%arg0: i32) -> (i32, i32) {
    %c0_i32 = arith.constant 0 : i32
    %c0_i32_0 = arith.constant 0 : i32
    %c0_i32_1 = arith.constant 0 : i32
    return %c0_i32, %c0_i32_0 : i32, i32
  }
  func.func @transform_5(%arg0: i32) -> (i32, i32) {
    %c0_i32 = arith.constant 0 : i32
    %c0_i32_0 = arith.constant 0 : i32
    %c0_i32_1 = arith.constant 0 : i32
    return %c0_i32, %c0_i32_0 : i32, i32
  }
  func.func @transform_6(%arg0: i32) -> (i32, i32) {
    %c0_i32 = arith.constant 0 : i32
    %c0_i32_0 = arith.constant 0 : i32
    %c0_i32_1 = arith.constant 0 : i32
    return %c0_i32, %c0_i32_0 : i32, i32
  }
  func.func @transform_7(%arg0: i32) -> (i32, i32) {
    %c0_i32 = arith.constant 0 : i32
    %c0_i32_0 = arith.constant 0 : i32
    %c0_i32_1 = arith.constant 0 : i32
    return %c0_i32, %c0_i32_0 : i32, i32
  }
  func.func @transform_8(%arg0: i32) -> (i32, i32) {
    %c0_i32 = arith.constant 0 : i32
    %c0_i32_0 = arith.constant 0 : i32
    %c0_i32_1 = arith.constant 0 : i32
    return %c0_i32, %c0_i32_0 : i32, i32
  }
  func.func @transform_9(%arg0: i32) -> (i32, i32) {
    %c0_i32 = arith.constant 0 : i32
    %c0_i32_0 = arith.constant 0 : i32
    return %c0_i32, %arg0 : i32, i32
  }
}

</mosaic_0001>

<llo_original>
// kernel: tpu_custom_call.1
$region0: #{tpu_custom_call.1}
  #allocation0 [shape = 'u32[]', space=smem, size = 0x4, offset = 0x4, fixed_abs, tag = 'smem constant byte address 0x4 - core index']
  #allocation1 [shape = 'u32[144,128]{1,0:T(1,128)}', space=vmem, size = 0x12000, scoped, tag = 'internal scratch']
  %s0 = inlined_call_operand.vmem [shape: f32[1,128], index: 0, kind: input, shape index: {}]
  %s1 = inlined_call_operand.vmem [shape: f32[64,1], index: 1, kind: input, shape index: {}]
  %s2 = inlined_call_operand.vmem [shape: f32[64,1], index: 2, kind: input, shape index: {}]
  %s3 = inlined_call_operand.vmem [shape: bf16[64,64], index: 3, kind: input, shape index: {}]
  %s4 = inlined_call_operand.vmem [shape: f32[64,1], index: 4, kind: input, shape index: {}]
  %s5 = inlined_call_operand.vmem [shape: bf16[32,64], index: 5, kind: input, shape index: {}]
  %s6 = inlined_call_operand.vmem [shape: f32[32,1], index: 6, kind: input, shape index: {}]
  %s7 = inlined_call_operand.vmem [shape: bf16[3,32], index: 7, kind: input, shape index: {}]
  %s8 = inlined_call_operand.vmem [shape: f32[3,1], index: 8, kind: input, shape index: {}]
  %s9 = inlined_call_operand.hbm [shape: f32[3,128], index: 9, kind: output, shape index: {}]
  %s10 = sld [smem:[#allocation0]]
  $region46: #{tpu_custom_call.1} parent=0
    _
  %s12 = ssub.s32 1, %s10
  %s13 = scalar_select 0, %s12, %s10
  $region1: #{tpu_custom_call.1} parent=0
    #allocation2 [shape = 'u8[2048]{0}', space=vmem, size = 0x800, scoped, tag = 'output window, operand 0, single buffered']
    #allocation3 [shape = 's32[1]{0}', space=sflag, size = 0x4, scoped, tag = 'scoped memory for tpu_custom_call.1']
    %14 = vsyncpa [#allocation3], 0
    // Predicated region
    $region2: #{tpu_custom_call.1} parent=1 // pred_check
      _
    $region3: #{tpu_custom_call.1} parent=1 // pred_check_branch
      %16 = sbr.rel (0) target = $region5
    $region4: #{tpu_custom_call.1} parent=1 // pred_region
      _
    $region5: #{tpu_custom_call.1} parent=1 // pred_fallthru
      _
    // Predicated region
    $region6: #{tpu_custom_call.1} parent=1 // pred_check
      _
    $region7: #{tpu_custom_call.1} parent=1 // pred_check_branch
      %18 = sbr.rel (0) target = $region9
    $region8: #{tpu_custom_call.1} parent=1 // pred_region
      _
    $region9: #{tpu_custom_call.1} parent=1 // pred_fallthru
      _
    // Predicated region
    $region10: #{tpu_custom_call.1} parent=1 // pred_check
      _
    $region11: #{tpu_custom_call.1} parent=1 // pred_check_branch
      %20 = sbr.rel (0) target = $region13
    $region12: #{tpu_custom_call.1} parent=1 // pred_region
      _
    $region13: #{tpu_custom_call.1} parent=1 // pred_fallthru
      _
    // Predicated region
    $region14: #{tpu_custom_call.1} parent=1 // pred_check
      _
    $region15: #{tpu_custom_call.1} parent=1 // pred_check_branch
      %22 = sbr.rel (0) target = $region17
    $region16: #{tpu_custom_call.1} parent=1 // pred_region
      _
    $region17: #{tpu_custom_call.1} parent=1 // pred_fallthru
      _
    // Predicated region
    $region18: #{tpu_custom_call.1} parent=1 // pred_check
      _
    $region19: #{tpu_custom_call.1} parent=1 // pred_check_branch
      %24 = sbr.rel (0) target = $region21
    $region20: #{tpu_custom_call.1} parent=1 // pred_region
      _
    $region21: #{tpu_custom_call.1} parent=1 // pred_fallthru
      _
    // Predicated region
    $region22: #{tpu_custom_call.1} parent=1 // pred_check
      _
    $region23: #{tpu_custom_call.1} parent=1 // pred_check_branch
      %26 = sbr.rel (0) target = $region25
    $region24: #{tpu_custom_call.1} parent=1 // pred_region
      _
    $region25: #{tpu_custom_call.1} parent=1 // pred_fallthru
      _
    // Predicated region
    $region26: #{tpu_custom_call.1} parent=1 // pred_check
      _
    $region27: #{tpu_custom_call.1} parent=1 // pred_check_branch
      %28 = sbr.rel (0) target = $region29
    $region28: #{tpu_custom_call.1} parent=1 // pred_region
      _
    $region29: #{tpu_custom_call.1} parent=1 // pred_fallthru
      _
    // Predicated region
    $region30: #{tpu_custom_call.1} parent=1 // pred_check
      _
    $region31: #{tpu_custom_call.1} parent=1 // pred_check_branch
      %30 = sbr.rel (0) target = $region33
    $region32: #{tpu_custom_call.1} parent=1 // pred_region
      _
    $region33: #{tpu_custom_call.1} parent=1 // pred_fallthru
      _
    // Predicated region
    $region34: #{tpu_custom_call.1} parent=1 // pred_check
      _
    $region35: #{tpu_custom_call.1} parent=1 // pred_check_branch
      %32 = sbr.rel (0) target = $region37
    $region36: #{tpu_custom_call.1} parent=1 // pred_region
      _
    $region37: #{tpu_custom_call.1} parent=1 // pred_fallthru
      _
    %v34 = vld [vmem:[%s0] sm:$0x1]
    %v35 = vld [vmem:[%s1] sm:$0xff]
    %v36 = vld [vmem:[%s1 + $0x8] sm:$0xff]
    %v37 = vld [vmem:[%s1 + $0x10] sm:$0xff]
    %v38 = vld [vmem:[%s1 + $0x18] sm:$0xff]
    %v39 = vld [vmem:[%s1 + $0x20] sm:$0xff]
    %v40 = vld [vmem:[%s1 + $0x28] sm:$0xff]
    %v41 = vld [vmem:[%s1 + $0x30] sm:$0xff]
    %v42 = vld [vmem:[%s1 + $0x38] sm:$0xff]
    %44 = vset.pattern.permute.xlu0 0
    %45 = vperm.xlu0 %44, %v35
    %v46 = vpop.permute.xlu0 %45
    %49 = vset.pattern.permute.xlu0 0
    %50 = vperm.xlu0 %49, %v36
    %v51 = vpop.permute.xlu0 %50
    %54 = vset.pattern.permute.xlu0 0
    %55 = vperm.xlu0 %54, %v37
    %v56 = vpop.permute.xlu0 %55
    %59 = vset.pattern.permute.xlu0 0
    %60 = vperm.xlu0 %59, %v38
    %v61 = vpop.permute.xlu0 %60
    %64 = vset.pattern.permute.xlu0 0
    %65 = vperm.xlu0 %64, %v39
    %v66 = vpop.permute.xlu0 %65
    %69 = vset.pattern.permute.xlu0 0
    %70 = vperm.xlu0 %69, %v40
    %v71 = vpop.permute.xlu0 %70
    %74 = vset.pattern.permute.xlu0 0
    %75 = vperm.xlu0 %74, %v41
    %v76 = vpop.permute.xlu0 %75
    %79 = vset.pattern.permute.xlu0 0
    %80 = vperm.xlu0 %79, %v42
    %v81 = vpop.permute.xlu0 %80
    %v84 = vlaneseq
    %v85 = vshrl.u32 %v84, 7
    %v86 = vsub.s32 0, %v85
    %v87 = vrot.slane %v34, %v86
    %v89 = vmul.f32 %v46, %v87
    %v90 = vmul.f32 %v51, %v87
    %v91 = vmul.f32 %v56, %v87
    %v92 = vmul.f32 %v61, %v87
    %v93 = vmul.f32 %v66, %v87
    %v94 = vmul.f32 %v71, %v87
    %v95 = vmul.f32 %v76, %v87
    %v96 = vmul.f32 %v81, %v87
    %v97 = vld [vmem:[%s2] sm:$0xff]
    %v98 = vld [vmem:[%s2 + $0x8] sm:$0xff]
    %v99 = vld [vmem:[%s2 + $0x10] sm:$0xff]
    %v100 = vld [vmem:[%s2 + $0x18] sm:$0xff]
    %v101 = vld [vmem:[%s2 + $0x20] sm:$0xff]
    %v102 = vld [vmem:[%s2 + $0x28] sm:$0xff]
    %v103 = vld [vmem:[%s2 + $0x30] sm:$0xff]
    %v104 = vld [vmem:[%s2 + $0x38] sm:$0xff]
    %106 = vset.pattern.permute.xlu0 0
    %107 = vperm.xlu0 %106, %v97
    %v108 = vpop.permute.xlu0 %107
    %111 = vset.pattern.permute.xlu0 0
    %112 = vperm.xlu0 %111, %v98
    %v113 = vpop.permute.xlu0 %112
    %116 = vset.pattern.permute.xlu0 0
    %117 = vperm.xlu0 %116, %v99
    %v118 = vpop.permute.xlu0 %117
    %121 = vset.pattern.permute.xlu0 0
    %122 = vperm.xlu0 %121, %v100
    %v123 = vpop.permute.xlu0 %122
    %126 = vset.pattern.permute.xlu0 0
    %127 = vperm.xlu0 %126, %v101
    %v128 = vpop.permute.xlu0 %127
    %131 = vset.pattern.permute.xlu0 0
    %132 = vperm.xlu0 %131, %v102
    %v133 = vpop.permute.xlu0 %132
    %136 = vset.pattern.permute.xlu0 0
    %137 = vperm.xlu0 %136, %v103
    %v138 = vpop.permute.xlu0 %137
    %141 = vset.pattern.permute.xlu0 0
    %142 = vperm.xlu0 %141, %v104
    %v143 = vpop.permute.xlu0 %142
    %v145 = vadd.f32 %v89, %v108
    %v146 = vadd.f32 %v90, %v113
    %v147 = vadd.f32 %v91, %v118
    %v148 = vadd.f32 %v92, %v123
    %v149 = vadd.f32 %v93, %v128
    %v150 = vadd.f32 %v94, %v133
    %v151 = vadd.f32 %v95, %v138
    %v152 = vadd.f32 %v96, %v143
    %v153 = vmax.f32 %v145, 0.0
    %v154 = vmax.f32 %v146, 0.0
    %v155 = vmax.f32 %v147, 0.0
    %v156 = vmax.f32 %v148, 0.0
    %v157 = vmax.f32 %v149, 0.0
    %v158 = vmax.f32 %v150, 0.0
    %v159 = vmax.f32 %v151, 0.0
    %v160 = vmax.f32 %v152, 0.0
    %v161 = vld [vmem:[%s3] sm:$0xf]
    %v162 = vld [vmem:[%s3 + $0x4] sm:$0xf]
    %v163 = vld [vmem:[%s3 + $0x8] sm:$0xf]
    %v164 = vld [vmem:[%s3 + $0xc] sm:$0xf]
    %v165 = vld [vmem:[%s3 + $0x10] sm:$0xf]
    %v166 = vld [vmem:[%s3 + $0x14] sm:$0xf]
    %v167 = vld [vmem:[%s3 + $0x18] sm:$0xf]
    %v168 = vld [vmem:[%s3 + $0x1c] sm:$0xf]
    %v169 = vpack.c.bf16 %v154, %v153
    %v170 = vpack.c.bf16 %v156, %v155
    %v171 = vpack.c.bf16 %v158, %v157
    %v172 = vpack.c.bf16 %v160, %v159
    %v173 = vld [vmem:[%s4] sm:$0xff]
    %v174 = vld [vmem:[%s4 + $0x8] sm:$0xff]
    %v175 = vld [vmem:[%s4 + $0x10] sm:$0xff]
    %v176 = vld [vmem:[%s4 + $0x18] sm:$0xff]
    %v177 = vld [vmem:[%s4 + $0x20] sm:$0xff]
    %v178 = vld [vmem:[%s4 + $0x28] sm:$0xff]
    %v179 = vld [vmem:[%s4 + $0x30] sm:$0xff]
    %v180 = vld [vmem:[%s4 + $0x38] sm:$0xff]
    %182 = vset.pattern.permute.xlu0 0
    %183 = vperm.xlu0 %182, %v173
    %v184 = vpop.permute.xlu0 %183
    %187 = vset.pattern.permute.xlu0 0
    %188 = vperm.xlu0 %187, %v174
    %v189 = vpop.permute.xlu0 %188
    %192 = vset.pattern.permute.xlu0 0
    %193 = vperm.xlu0 %192, %v175
    %v194 = vpop.permute.xlu0 %193
    %197 = vset.pattern.permute.xlu0 0
    %198 = vperm.xlu0 %197, %v176
    %v199 = vpop.permute.xlu0 %198
    %202 = vset.pattern.permute.xlu0 0
    %203 = vperm.xlu0 %202, %v177
    %v204 = vpop.permute.xlu0 %203
    %207 = vset.pattern.permute.xlu0 0
    %208 = vperm.xlu0 %207, %v178
    %v209 = vpop.permute.xlu0 %208
    %212 = vset.pattern.permute.xlu0 0
    %213 = vperm.xlu0 %212, %v179
    %v214 = vpop.permute.xlu0 %213
    %217 = vset.pattern.permute.xlu0 0
    %218 = vperm.xlu0 %217, %v180
    %v219 = vpop.permute.xlu0 %218
    %v229 = vunpack.c.l.b16 %v161
    %v230 = vunpack.c.l.b16 %v162
    %v231 = vunpack.c.l.b16 %v163
    %v232 = vunpack.c.l.b16 %v164
    %v233 = vunpack.c.l.b16 %v165
    %v234 = vunpack.c.l.b16 %v166
    %v235 = vunpack.c.l.b16 %v167
    %v236 = vunpack.c.l.b16 %v168
    %v237 = vpack.c.b16 %v230, %v229
    %v238 = vpack.c.b16 %v232, %v231
    %v239 = vpack.c.b16 %v234, %v233
    %v240 = vpack.c.b16 %v236, %v235
    %vm241 = vcmask 523264
    %v243 = vsel %vm241, %v237, 0
    %v246 = vsel %vm241, %v238, 0
    %v249 = vsel %vm241, %v239, 0
    %v252 = vsel %vm241, %v240, 0
    %254 = vmatprep.subr.bf16.mxu0 0
    %255 = vmatpush1.bf16.msra.mxu0 0
    %256 = vmatprep.subr.bf16.mxu0 0
    %257 = vmatpush1.bf16.msra.mxu0 0
    %258 = vmatprep.subr.bf16.mxu0 0
    %259 = vmatpush1.bf16.msra.mxu0 0
    %260 = vmatprep.subr.bf16.mxu0 0
    %261 = vmatpush1.bf16.msra.mxu0 0
    %262 = vmatprep.subr.bf16.mxu0 0
    %263 = vmatpush1.bf16.msra.mxu0 %v172
    %264 = vmatprep.subr.bf16.mxu0 0
    %265 = vmatpush1.bf16.msra.mxu0 %v171
    %266 = vmatprep.subr.bf16.mxu0 0
    %267 = vmatpush1.bf16.msra.mxu0 %v170
    %268 = vmatprep.subr.bf16.mxu0 0
    %269 = vmatpush1.bf16.msra.mxu0 %v169
    %270 = vmatprep.subr.bf16.mxu0 0
    %271 = vmatpush2.bf16.msra.mxu0 0
    %272 = vmatprep.subr.bf16.mxu0 0
    %273 = vmatpush2.bf16.msra.mxu0 0
    %274 = vmatprep.subr.bf16.mxu0 0
    %275 = vmatpush2.bf16.msra.mxu0 0
    %276 = vmatprep.subr.bf16.mxu0 0
    %277 = vmatpush2.bf16.msra.mxu0 0
    %278 = vmatprep.subr.bf16.mxu0 0
    %279 = vmatpush2.bf16.msra.mxu0 0
    %280 = vmatprep.subr.bf16.mxu0 0
    %281 = vmatpush2.bf16.msra.mxu0 0
    %282 = vmatprep.subr.bf16.mxu0 0
    %283 = vmatpush2.bf16.msra.mxu0 0
    %284 = vmatprep.subr.bf16.mxu0 0
    %285 = vmatpush2.bf16.msra.mxu0 0
    %286 = vmatprep.mubr.bf16.mxu0 0
    %287 = vmatmul.mubr.bf16.gmra.mxu0 %v243
    %v288 = vpop.f32.mrf.mxu0
    %v289 = vadd.f32 %v184, %v288
    %v290 = vpop.f32.mrf.mxu0
    %v291 = vpop.f32.mrf.mxu0
    %v292 = vadd.f32 %v189, %v291
    %v293 = vpop.f32.mrf.mxu0
    %294 = vmatprep.mubr.bf16.mxu0 0
    %295 = vmatmul.mubr.bf16.gmra.mxu0 %v246
    %v296 = vpop.f32.mrf.mxu0
    %v297 = vadd.f32 %v194, %v296
    %v298 = vpop.f32.mrf.mxu0
    %v299 = vpop.f32.mrf.mxu0
    %v300 = vadd.f32 %v199, %v299
    %v301 = vpop.f32.mrf.mxu0
    %302 = vmatprep.mubr.bf16.mxu0 0
    %303 = vmatmul.mubr.bf16.gmra.mxu0 %v249
    %v304 = vpop.f32.mrf.mxu0
    %v305 = vadd.f32 %v204, %v304
    %v306 = vpop.f32.mrf.mxu0
    %v307 = vpop.f32.mrf.mxu0
    %v308 = vadd.f32 %v209, %v307
    %v309 = vpop.f32.mrf.mxu0
    %310 = vmatprep.mubr.bf16.mxu0 0
    %311 = vmatmul.mubr.bf16.gmra.mxu0 %v252
    %v312 = vpop.f32.mrf.mxu0
    %v313 = vadd.f32 %v214, %v312
    %v314 = vpop.f32.mrf.mxu0
    %v315 = vpop.f32.mrf.mxu0
    %v316 = vadd.f32 %v219, %v315
    %v317 = vpop.f32.mrf.mxu0
    %318 = vdwg.mxu0
    %v319 = vmax.f32 %v289, 0.0
    %v320 = vmax.f32 %v292, 0.0
    %v321 = vmax.f32 %v297, 0.0
    %v322 = vmax.f32 %v300, 0.0
    %v323 = vmax.f32 %v305, 0.0
    %v324 = vmax.f32 %v308, 0.0
    %v325 = vmax.f32 %v313, 0.0
    %v326 = vmax.f32 %v316, 0.0
    %v327 = vld [vmem:[%s5] sm:$0xf]
    %v328 = vld [vmem:[%s5 + $0x4] sm:$0xf]
    %v329 = vld [vmem:[%s5 + $0x8] sm:$0xf]
    %v330 = vld [vmem:[%s5 + $0xc] sm:$0xf]
    %v331 = vpack.c.bf16 %v320, %v319
    %v332 = vpack.c.bf16 %v322, %v321
    %v333 = vpack.c.bf16 %v324, %v323
    %v334 = vpack.c.bf16 %v326, %v325
    %v335 = vld [vmem:[%s6] sm:$0xff]
    %v336 = vld [vmem:[%s6 + $0x8] sm:$0xff]
    %v337 = vld [vmem:[%s6 + $0x10] sm:$0xff]
    %v338 = vld [vmem:[%s6 + $0x18] sm:$0xff]
    %340 = vset.pattern.permute.xlu0 0
    %341 = vperm.xlu0 %340, %v335
    %v342 = vpop.permute.xlu0 %341
    %345 = vset.pattern.permute.xlu0 0
    %346 = vperm.xlu0 %345, %v336
    %v347 = vpop.permute.xlu0 %346
    %350 = vset.pattern.permute.xlu0 0
    %351 = vperm.xlu0 %350, %v337
    %v352 = vpop.permute.xlu0 %351
    %355 = vset.pattern.permute.xlu0 0
    %356 = vperm.xlu0 %355, %v338
    %v357 = vpop.permute.xlu0 %356
    %v363 = vunpack.c.l.b16 %v327
    %v364 = vunpack.c.l.b16 %v328
    %v365 = vunpack.c.l.b16 %v329
    %v366 = vunpack.c.l.b16 %v330
    %v367 = vpack.c.b16 %v364, %v363
    %v368 = vpack.c.b16 %v366, %v365
    %v370 = vsel %vm241, %v367, 0
    %v373 = vsel %vm241, %v368, 0
    %375 = vmatprep.subr.bf16.mxu0 0
    %376 = vmatpush1.bf16.msra.mxu0 0
    %377 = vmatprep.subr.bf16.mxu0 0
    %378 = vmatpush1.bf16.msra.mxu0 0
    %379 = vmatprep.subr.bf16.mxu0 0
    %380 = vmatpush1.bf16.msra.mxu0 0
    %381 = vmatprep.subr.bf16.mxu0 0
    %382 = vmatpush1.bf16.msra.mxu0 0
    %383 = vmatprep.subr.bf16.mxu0 0
    %384 = vmatpush1.bf16.msra.mxu0 %v334
    %385 = vmatprep.subr.bf16.mxu0 0
    %386 = vmatpush1.bf16.msra.mxu0 %v333
    %387 = vmatprep.subr.bf16.mxu0 0
    %388 = vmatpush1.bf16.msra.mxu0 %v332
    %389 = vmatprep.subr.bf16.mxu0 0
    %390 = vmatpush1.bf16.msra.mxu0 %v331
    %391 = vmatprep.subr.bf16.mxu0 0
    %392 = vmatpush2.bf16.msra.mxu0 0
    %393 = vmatprep.subr.bf16.mxu0 0
    %394 = vmatpush2.bf16.msra.mxu0 0
    %395 = vmatprep.subr.bf16.mxu0 0
    %396 = vmatpush2.bf16.msra.mxu0 0
    %397 = vmatprep.subr.bf16.mxu0 0
    %398 = vmatpush2.bf16.msra.mxu0 0
    %399 = vmatprep.subr.bf16.mxu0 0
    %400 = vmatpush2.bf16.msra.mxu0 0
    %401 = vmatprep.subr.bf16.mxu0 0
    %402 = vmatpush2.bf16.msra.mxu0 0
    %403 = vmatprep.subr.bf16.mxu0 0
    %404 = vmatpush2.bf16.msra.mxu0 0
    %405 = vmatprep.subr.bf16.mxu0 0
    %406 = vmatpush2.bf16.msra.mxu0 0
    %407 = vmatprep.mubr.bf16.mxu0 0
    %408 = vmatmul.mubr.bf16.gmra.mxu0 %v370
    %v409 = vpop.f32.mrf.mxu0
    %v410 = vadd.f32 %v342, %v409
    %v411 = vpop.f32.mrf.mxu0
    %v412 = vpop.f32.mrf.mxu0
    %v413 = vadd.f32 %v347, %v412
    %v414 = vpop.f32.mrf.mxu0
    %415 = vmatprep.mubr.bf16.mxu0 0
    %416 = vmatmul.mubr.bf16.gmra.mxu0 %v373
    %v417 = vpop.f32.mrf.mxu0
    %v418 = vadd.f32 %v352, %v417
    %v419 = vpop.f32.mrf.mxu0
    %v420 = vpop.f32.mrf.mxu0
    %v421 = vadd.f32 %v357, %v420
    %v422 = vpop.f32.mrf.mxu0
    %423 = vdwg.mxu0
    %v424 = vmax.f32 %v410, 0.0
    %v425 = vmax.f32 %v413, 0.0
    %v426 = vmax.f32 %v418, 0.0
    %v427 = vmax.f32 %v421, 0.0
    %v428 = vld [vmem:[%s7] sm:$0x3]
    %v429 = vpack.c.bf16 %v425, %v424
    %v430 = vpack.c.bf16 %v427, %v426
    %v431 = vld [vmem:[%s8] sm:$0x7]
    %433 = vset.pattern.permute.xlu0 0
    %434 = vperm.xlu0 %433, %v431
    %v435 = vpop.permute.xlu0 %434
    %vm437 = vcmask 261120
    %v439 = vsel %vm437, %v428, 0
    %441 = vmatprep.subr.bf16.mxu0 0
    %442 = vmatpush1.bf16.msra.mxu0 0
    %443 = vmatprep.subr.bf16.mxu0 0
    %444 = vmatpush1.bf16.msra.mxu0 0
    %445 = vmatprep.subr.bf16.mxu0 0
    %446 = vmatpush1.bf16.msra.mxu0 0
    %447 = vmatprep.subr.bf16.mxu0 0
    %448 = vmatpush1.bf16.msra.mxu0 0
    %449 = vmatprep.subr.bf16.mxu0 0
    %450 = vmatpush1.bf16.msra.mxu0 0
    %451 = vmatprep.subr.bf16.mxu0 0
    %452 = vmatpush1.bf16.msra.mxu0 0
    %453 = vmatprep.subr.bf16.mxu0 0
    %454 = vmatpush1.bf16.msra.mxu0 %v430
    %455 = vmatprep.subr.bf16.mxu0 0
    %456 = vmatpush1.bf16.msra.mxu0 %v429
    %457 = vmatprep.subr.bf16.mxu0 0
    %458 = vmatpush2.bf16.msra.mxu0 0
    %459 = vmatprep.subr.bf16.mxu0 0
    %460 = vmatpush2.bf16.msra.mxu0 0
    %461 = vmatprep.subr.bf16.mxu0 0
    %462 = vmatpush2.bf16.msra.mxu0 0
    %463 = vmatprep.subr.bf16.mxu0 0
    %464 = vmatpush2.bf16.msra.mxu0 0
    %465 = vmatprep.subr.bf16.mxu0 0
    %466 = vmatpush2.bf16.msra.mxu0 0
    %467 = vmatprep.subr.bf16.mxu0 0
    %468 = vmatpush2.bf16.msra.mxu0 0
    %469 = vmatprep.subr.bf16.mxu0 0
    %470 = vmatpush2.bf16.msra.mxu0 0
    %471 = vmatprep.subr.bf16.mxu0 0
    %472 = vmatpush2.bf16.msra.mxu0 0
    %473 = vmatprep.mubr.bf16.mxu0 0
    %474 = vmatmul.mubr.bf16.gmra.mxu0 %v439
    %v475 = vpop.f32.mrf.mxu0
    %v476 = vadd.f32 %v435, %v475
    %v477 = vpop.f32.mrf.mxu0
    %v478 = vpop.f32.mrf.mxu0
    %v479 = vpop.f32.mrf.mxu0
    %480 = vdwg.mxu0
    %481 = vst [vmem:[#allocation2] sm:$0x7] %v476
    // Predicated region
    $region38: #{tpu_custom_call.1} parent=1 // pred_check
      _
    $region39: #{tpu_custom_call.1} parent=1 // pred_check_branch
      %483 = sbr.rel (0) target = $region41
    $region40: #{tpu_custom_call.1} parent=1 // pred_region
      %s485 = ssub.s32 64, 64
      %486 = vsyncadd [#allocation3], %s485
      %s488 = sshll.u32 [#allocation2], 4
      %s489 = int_to_ptr.vmem [resolvable:$true] %s488
      %491 = dma.vmem_to_hbm [thread:$0]  %s489, 64, %s9, [#allocation3]
    $region41: #{tpu_custom_call.1} parent=1 // pred_fallthru
      _
    // Predicated region
    $region42: #{tpu_custom_call.1} parent=1 // pred_check
      _
    $region43: #{tpu_custom_call.1} parent=1 // pred_check_branch
      %493 = sbr.rel (0) target = $region45
    $region44: #{tpu_custom_call.1} parent=1 // pred_region
      %494 = dma.done [#allocation3], 64
    $region45: #{tpu_custom_call.1} parent=1 // pred_fallthru
      _
    %495 = vsyncpa [#allocation3], 1

</llo_original>
